<compile_context>
chip_gen: v7x
topology: tpu7x:2x2x1
jax: 0.10.0
libtpu: 0.0.40
codegen_flags: <defaults>
</compile_context>

<pallas_src>
import jax
import jax.numpy as jnp
from jax.experimental import pallas as pl
from jax.experimental.pallas import tpu as pltpu


def fused_linear_kernel(w_ref, b_ref, x_ref, o_ref):
    # w_ref: SMEM [2]  (fused weight = w1 @ w2)
    # b_ref: SMEM [1]  (fused bias   = b1 @ w2 + b2)
    # x_ref: VMEM [2, TILE]  feature-major tile (batch on the lane axis)
    # o_ref: VMEM [1, TILE]  lane-dense output tile
    w0 = w_ref[0]
    w1 = w_ref[1]
    b = b_ref[0]
    # Pure per-lane FMAs on the VPU (no MXU, no cross-lane traffic).
    o_ref[...] = x_ref[0:1, :] * w0 + x_ref[1:2, :] * w1 + b


def circle_model_v0(x, w1, b1, w2, b2, tile=131072):
    """Forward pass of CircleModelV0.

    x  : [N, 2]  float32
    w1 : [2, 5]  (transposed PyTorch layer_1.weight)
    b1 : [1, 5]
    w2 : [5, 1]  (transposed PyTorch layer_2.weight)
    b2 : [1, 1]
    returns [N, 1] float32 (matches layer_2(layer_1(x)))
    """
    N = x.shape[0]

    # --- algebraic fusion of the two bias-linear layers (wrapper-side) -----
    w_fused = (w1 @ w2).reshape(2).astype(jnp.float32)          # [2]
    b_fused = (b1 @ w2 + b2).reshape(1).astype(jnp.float32)     # [1]

    # --- lane-dense, tiled layout ------------------------------------------
    # Don't tile beyond (128-rounded) N; keep tile a multiple of 128 lanes.
    tile = min(tile, max(128, pl.cdiv(N, 128) * 128))
    n_pad = pl.cdiv(N, tile) * tile
    num_tiles = n_pad // tile

    # Feature-major [2, N_pad]; padded tail rows are harmless (sliced off).
    xt = jnp.zeros((2, n_pad), jnp.float32).at[:, :N].set(x.T)

    out = pl.pallas_call(
        fused_linear_kernel,
        out_shape=jax.ShapeDtypeStruct((1, n_pad), jnp.float32),
        grid=(num_tiles,),
        in_specs=[
            pl.BlockSpec(memory_space=pltpu.SMEM),              # fused weight
            pl.BlockSpec(memory_space=pltpu.SMEM),              # fused bias
            pl.BlockSpec((2, tile), lambda i: (0, i)),          # x tile
        ],
        out_specs=pl.BlockSpec((1, tile), lambda i: (0, i)),    # y tile
        compiler_params=pltpu.CompilerParams(
            dimension_semantics=("parallel",)),
    )(w_fused, b_fused, xt)

    # Back to the PyTorch-shaped [N, 1] output.
    return out[0, :N].reshape(N, 1)


def init_params(key):
    # Deterministic PyTorch-style init: U(-1/sqrt(fan_in), 1/sqrt(fan_in)).
    k1, k2, k3, k4 = jax.random.split(key, 4)
    bound1 = 1.0 / jnp.sqrt(2.0)   # layer_1: in_features=2
    bound2 = 1.0 / jnp.sqrt(5.0)   # layer_2: in_features=5
    w1 = jax.random.uniform(k1, (2, 5), jnp.float32, -bound1, bound1)
    b1 = jax.random.uniform(k2, (1, 5), jnp.float32, -bound1, bound1)
    w2 = jax.random.uniform(k3, (5, 1), jnp.float32, -bound2, bound2)
    b2 = jax.random.uniform(k4, (1, 1), jnp.float32, -bound2, bound2)
    return w1, b1, w2, b2


if __name__ == "__main__":
    key = jax.random.PRNGKey(0)
    pkey, xkey = jax.random.split(key)
    w1, b1, w2, b2 = init_params(pkey)

    N = 8
    x = jax.random.normal(xkey, (N, 2), jnp.float32)

    out = circle_model_v0(x, w1, b1, w2, b2)
    out = jax.block_until_ready(out)

    # Reference check against plain JAX (same math as the PyTorch forward).
    ref = (x @ w1 + b1) @ w2 + b2
    assert out.shape == (N, 1)
    assert jnp.allclose(out, ref, atol=1e-5, rtol=1e-5)

    print("KERNEL_OK")
</pallas_src>

<mosaic_0001>
module attributes {stable_mosaic.version = 11 : i64} {
  func.func @fused_linear_kernel(%arg0: i32, %arg1: memref<2xf32, #tpu.memory_space<smem>>, %arg2: memref<1xf32, #tpu.memory_space<smem>>, %arg3: memref<2x128xf32, #tpu.memory_space<vmem>>, %arg4: memref<1x128xf32, #tpu.memory_space<vmem>>) attributes {dimension_semantics = [#tpu.dimension_semantics<parallel>], iteration_bounds = array<i64: 1>, scalar_prefetch = 0 : i64, scratch_operands = 0 : i64, tpu.core_type = #tpu.core_type<tc>, window_params = [{transform_indices = @transform_0, window_bounds = array<i64: 2>}, {transform_indices = @transform_1, window_bounds = array<i64: 1>}, {transform_indices = @transform_2, window_bounds = array<i64: 2, 128>}, {transform_indices = @transform_3, window_bounds = array<i64: 1, 128>}]} {
    %c0 = arith.constant 0 : index
    %0 = memref.load %arg1[%c0] : memref<2xf32, #tpu.memory_space<smem>>
    %c1 = arith.constant 1 : index
    %1 = memref.load %arg1[%c1] : memref<2xf32, #tpu.memory_space<smem>>
    %c0_0 = arith.constant 0 : index
    %2 = memref.load %arg2[%c0_0] : memref<1xf32, #tpu.memory_space<smem>>
    %c0_1 = arith.constant 0 : index
    %c0_2 = arith.constant 0 : index
    %3 = vector.load %arg3[%c0_1, %c0_2] : memref<2x128xf32, #tpu.memory_space<vmem>>, vector<1x128xf32>
    %4 = vector.broadcast %0 : f32 to vector<1x128xf32>
    %5 = arith.mulf %3, %4 : vector<1x128xf32>
    %c1_3 = arith.constant 1 : index
    %c0_4 = arith.constant 0 : index
    %6 = vector.load %arg3[%c1_3, %c0_4] : memref<2x128xf32, #tpu.memory_space<vmem>>, vector<1x128xf32>
    %7 = vector.broadcast %1 : f32 to vector<1x128xf32>
    %8 = arith.mulf %6, %7 : vector<1x128xf32>
    %9 = arith.addf %5, %8 : vector<1x128xf32>
    %10 = vector.broadcast %2 : f32 to vector<1x128xf32>
    %11 = arith.addf %9, %10 : vector<1x128xf32>
    %c0_5 = arith.constant 0 : index
    %c0_6 = arith.constant 0 : index
    %12 = vector.load %arg4[%c0_5, %c0_6] : memref<1x128xf32, #tpu.memory_space<vmem>>, vector<1x128xf32>
    tpu.vector_store %arg4[%c0_5, %c0_6], %11 {strides = array<i32>} : memref<1x128xf32, #tpu.memory_space<vmem>>, vector<1x128xf32>,
    return
  }
  func.func @transform_0(%arg0: i32) -> i32 {
    %c0_i32 = arith.constant 0 : i32
    %c0_i32_0 = arith.constant 0 : i32
    return %c0_i32 : i32
  }
  func.func @transform_1(%arg0: i32) -> i32 {
    %c0_i32 = arith.constant 0 : i32
    %c0_i32_0 = arith.constant 0 : i32
    return %c0_i32 : i32
  }
  func.func @transform_2(%arg0: i32) -> (i32, i32) {
    %c0_i32 = arith.constant 0 : i32
    %c0_i32_0 = arith.constant 0 : i32
    return %c0_i32, %arg0 : i32, i32
  }
  func.func @transform_3(%arg0: i32) -> (i32, i32) {
    %c0_i32 = arith.constant 0 : i32
    %c0_i32_0 = arith.constant 0 : i32
    return %c0_i32, %arg0 : i32, i32
  }
}

</mosaic_0001>

<llo_original>
// kernel: tpu_custom_call.1
$region0: #{tpu_custom_call.1}
  #allocation0 [shape = 'u32[]', space=smem, size = 0x4, offset = 0x4, fixed_abs, tag = 'smem constant byte address 0x4 - core index']
  #allocation1 [shape = 'u32[144,128]{1,0:T(1,128)}', space=vmem, size = 0x12000, scoped, tag = 'internal scratch']
  #allocation2 [shape = 'f32[1]{0:T(128)S(6)}', space=smem, size = 0x200, scoped, tag = 'scoped memory for tpu_custom_call.1']
  %s0 = inlined_call_operand.vmem [shape: f32[2], index: 0, kind: input, shape index: {}]
  %s1 = inlined_call_operand.<no memory space> [shape: f32[1], index: 1, kind: input, shape index: {}]
  %s2 = inlined_call_operand.vmem [shape: f32[2,128], index: 2, kind: input, shape index: {}]
  %s3 = inlined_call_operand.hbm [shape: f32[1,128], index: 3, kind: output, shape index: {}]
  %s4 = sld [smem:[#allocation0]]
  $region26: #{tpu_custom_call.1} parent=0
    _
  %s6 = ssub.s32 1, %s4
  %s7 = scalar_select 0, %s6, %s4
  %8 = sst [smem:[#allocation2]] %s1
  $region1: #{tpu_custom_call.1} parent=0
    #allocation3 [shape = 'u8[512]{0}', space=smem, size = 0x200, scoped, tag = 'input window, operand 0, single buffered']
    #allocation4 [shape = 's32[1]{0}', space=sflag, size = 0x4, scoped, tag = 'scoped memory for tpu_custom_call.1']
    #allocation5 [shape = 's32[1]{0}', space=sflag, size = 0x4, scoped, tag = 'scoped memory for tpu_custom_call.1']
    #allocation6 [shape = 'u8[512]{0}', space=vmem, size = 0x400, scoped, tag = 'output window, operand 0, single buffered']
    %9 = vsyncpa [#allocation5], 0
    %10 = vsyncpa [#allocation4], 0
    // Predicated region
    $region2: #{tpu_custom_call.1} parent=1 // pred_check
      _
    $region3: #{tpu_custom_call.1} parent=1 // pred_check_branch
      %12 = sbr.rel (0) target = $region5
    $region4: #{tpu_custom_call.1} parent=1 // pred_region
      %s14 = ssub.s32 16, 16
      %15 = vsyncadd [#allocation5], %s14
      %s17 = sshll.u32 %s0, 4
      %s18 = int_to_ptr.vmem [resolvable:$true] %s17
      %20 = dma.vmem_to_smem %s18, 16, [#allocation3], [#allocation5]
    $region5: #{tpu_custom_call.1} parent=1 // pred_fallthru
      _
    // Predicated region
    $region6: #{tpu_custom_call.1} parent=1 // pred_check
      _
    $region7: #{tpu_custom_call.1} parent=1 // pred_check_branch
      %22 = sbr.rel (0) target = $region9
    $region8: #{tpu_custom_call.1} parent=1 // pred_region
      _
    $region9: #{tpu_custom_call.1} parent=1 // pred_fallthru
      _
    // Predicated region
    $region10: #{tpu_custom_call.1} parent=1 // pred_check
      _
    $region11: #{tpu_custom_call.1} parent=1 // pred_check_branch
      %24 = sbr.rel (0) target = $region13
    $region12: #{tpu_custom_call.1} parent=1 // pred_region
      _
    $region13: #{tpu_custom_call.1} parent=1 // pred_fallthru
      _
    // Predicated region
    $region14: #{tpu_custom_call.1} parent=1 // pred_check
      _
    $region15: #{tpu_custom_call.1} parent=1 // pred_check_branch
      %26 = sbr.rel (0) target = $region17
    $region16: #{tpu_custom_call.1} parent=1 // pred_region
      %27 = dma.done [#allocation5], 16
    $region17: #{tpu_custom_call.1} parent=1 // pred_fallthru
      _
    %28 = sfence
    %s29 = sld [smem:[#allocation3]]
    %s30 = sld [smem:[#allocation3 + $0x1]]
    %s31 = sld [smem:[#allocation2]]
    %v32 = vld [vmem:[%s2] sm:$0x1]
    %v33 = vstv %s29
    %v34 = vmul.f32 %v32, %v33
    %v35 = vld [vmem:[%s2 + $0x1] sm:$0x1]
    %v36 = vstv %s30
    %v37 = vmul.f32 %v35, %v36
    %v38 = vadd.f32 %v34, %v37
    %v39 = vstv %s31
    %v40 = vadd.f32 %v38, %v39
    %41 = vst [vmem:[#allocation6] sm:$0x1] %v40
    // Predicated region
    $region18: #{tpu_custom_call.1} parent=1 // pred_check
      _
    $region19: #{tpu_custom_call.1} parent=1 // pred_check_branch
      %43 = sbr.rel (0) target = $region21
    $region20: #{tpu_custom_call.1} parent=1 // pred_region
      %s45 = ssub.s32 16, 16
      %46 = vsyncadd [#allocation4], %s45
      %s48 = sshll.u32 [#allocation6], 4
      %s49 = int_to_ptr.vmem [resolvable:$true] %s48
      %51 = dma.vmem_to_hbm [thread:$0]  %s49, 16, %s3, [#allocation4]
    $region21: #{tpu_custom_call.1} parent=1 // pred_fallthru
      _
    // Predicated region
    $region22: #{tpu_custom_call.1} parent=1 // pred_check
      _
    $region23: #{tpu_custom_call.1} parent=1 // pred_check_branch
      %53 = sbr.rel (0) target = $region25
    $region24: #{tpu_custom_call.1} parent=1 // pred_region
      %54 = dma.done [#allocation4], 16
    $region25: #{tpu_custom_call.1} parent=1 // pred_fallthru
      _
    %55 = vsyncpa [#allocation4], 1
    %56 = vsyncpa [#allocation5], 1

</llo_original>
